<compile_context>
chip_gen: v6e
topology: v6e:2x2x1
jax: 0.10.0
libtpu: 0.0.40
codegen_flags: <defaults>
</compile_context>

<pallas_src>
import functools

import jax
import jax.numpy as jnp
from jax.experimental import pallas as pl
from jax.experimental.pallas import tpu as pltpu


def _actnorm_kernel(x_ref, sb_ref, h_ref):
    # x_ref:  (TR, TL)  tile of the (NC_p, HW_p) activation slab
    # sb_ref: (TR, 2)   packed per-row [scale, bias]
    # h_ref:  (TR, TL)  output tile
    scale = sb_ref[:, 0:1]
    bias = sb_ref[:, 1:2]
    h_ref[...] = x_ref[...] * scale + bias


def _round_up(n, m):
    return ((n + m - 1) // m) * m


def _largest_aligned_divisor(dim, align, max_val):
    """Largest multiple of `align` that divides `dim` and is <= max_val.

    `dim` must already be a multiple of `align` (guaranteed by padding)."""
    t = min(dim, (max_val // align) * align)
    t = max(t, align)
    while dim % t != 0:
        t -= align
    return t


def _vmem_budget():
    """(per-tile byte cap, vmem_limit_bytes) derived from the chip generation."""
    try:
        cap = pltpu.get_tpu_info().vmem_capacity_bytes
    except Exception:  # pragma: no cover - conservative fallback (v7x per-TC)
        cap = 64 * 1024 * 1024
    # Double-buffered in+out working set ~= 4 * tile_bytes.  Keep the working
    # set under min(cap/4, 32 MiB): ~16 MiB on v7x (64 MiB/TC), ~32 MiB on
    # v5e/v6e (128 MiB).
    working_set = min(cap // 4, 32 * 1024 * 1024)
    tile_cap = max(working_set // 4, 2 * 1024 * 1024)
    vmem_limit = int(min(cap // 2, 2 * working_set + (4 << 20)))
    return tile_cap, vmem_limit


@functools.partial(jax.jit, static_argnames=("logdet", "reverse"))
def actnorm_forward(x, loc, scale, *, logdet=False, reverse=False):
    """ActNorm forward (eval mode).  Matches the PyTorch module.

    x:     (N, C, H, W) or (N, C)
    loc:   (1, C, 1, 1)
    scale: (1, C, 1, 1)
    """
    squeeze = False
    if x.ndim == 2:
        x = x[:, :, None, None]
        squeeze = True

    N, C, H, W = x.shape
    HW = H * W
    NC = N * C
    itemsize = jnp.dtype(x.dtype).itemsize
    sub_align = max(8, 32 // itemsize)          # 8 f32 / 16 bf16 / 32 int8

    # ---- per-row packed [scale, bias] (params prepared in f32) -------------
    scale_c = scale.reshape(C).astype(jnp.float32)
    loc_c = loc.reshape(C).astype(jnp.float32)
    if reverse:
        eff_scale = 1.0 / scale_c               # h = x/scale - loc
        eff_bias = -loc_c
    else:
        eff_scale = scale_c                     # h = scale*(x + loc)
        eff_bias = scale_c * loc_c
    sb = jnp.stack([eff_scale, eff_bias], axis=1).astype(x.dtype)   # (C, 2)
    sb_rows = jnp.tile(sb, (N, 1))                                  # (NC, 2)

    # ---- lane-dense / sublane-aligned slab (pad, never full-dim fallback) --
    NC_p = _round_up(NC, sub_align)
    HW_p = _round_up(HW, 128)
    x2 = x.reshape(NC, HW)
    if (NC_p, HW_p) != (NC, HW):
        x2 = jnp.pad(x2, ((0, NC_p - NC), (0, HW_p - HW)))
    if NC_p != NC:
        sb_rows = jnp.pad(sb_rows, ((0, NC_p - NC), (0, 0)))

    # ---- generation-aware tile selection ------------------------------------
    tile_cap_bytes, vmem_limit = _vmem_budget()
    row_bytes = HW_p * itemsize
    if sub_align * row_bytes <= tile_cap_bytes:
        # Full rows: one long contiguous HBM run per block; tile over rows only.
        tl = HW_p
        tr = _largest_aligned_divisor(NC_p, sub_align, tile_cap_bytes // row_bytes)
        # Keep >= 2 row-blocks when possible so the "parallel" leading axis
        # can shard across both TensorCores (v7x).
        if NC_p // tr < 2 and NC_p >= 2 * sub_align:
            tr = _largest_aligned_divisor(NC_p, sub_align, max(NC_p // 2, sub_align))
    else:
        # A single row exceeds the budget: split the lane axis as well.
        tr = sub_align
        tl = _largest_aligned_divisor(
            HW_p, 128, max(tile_cap_bytes // (sub_align * itemsize), 128))
    grid = (NC_p // tr, HW_p // tl)

    cost = pl.CostEstimate(
        flops=2 * NC_p * HW_p,
        transcendentals=0,
        bytes_accessed=2 * NC_p * HW_p * itemsize + 2 * NC_p * itemsize,
    )

    h2 = pl.pallas_call(
        _actnorm_kernel,
        out_shape=jax.ShapeDtypeStruct((NC_p, HW_p), x.dtype),
        grid_spec=pltpu.PrefetchScalarGridSpec(
            num_scalar_prefetch=0,
            grid=grid,
            in_specs=[
                pl.BlockSpec((tr, tl), lambda i, j: (i, j)),
                pl.BlockSpec((tr, 2), lambda i, j: (i, 0)),
            ],
            out_specs=pl.BlockSpec((tr, tl), lambda i, j: (i, j)),
        ),
        compiler_params=pltpu.CompilerParams(
            dimension_semantics=("parallel", "parallel"),
            vmem_limit_bytes=vmem_limit,
        ),
        cost_estimate=cost,
    )(x2, sb_rows)

    if (NC_p, HW_p) != (NC, HW):
        h2 = h2[:NC, :HW]
    h = h2.reshape(N, C, H, W)
    if squeeze:
        h = h.reshape(N, C)

    if logdet:
        # logdet depends only on scale -> compute outside the kernel;
        # cast to x.dtype to mirror torch's `.to(input)`.
        log_abs = jnp.log(jnp.abs(scale_c))
        ld = (HW * jnp.sum(log_abs)).astype(x.dtype)
        logdet_out = ld * jnp.ones((N,), dtype=x.dtype)
        return h, logdet_out
    return h


def _reference_forward(x, loc, scale, *, logdet=False, reverse=False):
    squeeze = False
    if x.ndim == 2:
        x = x[:, :, None, None]
        squeeze = True
    _, _, H, W = x.shape
    if reverse:
        h = x / scale - loc
    else:
        h = scale * (x + loc)
    if squeeze:
        h = h.reshape(h.shape[0], h.shape[1])
    if logdet:
        log_abs = jnp.log(jnp.abs(scale))
        ld = H * W * jnp.sum(log_abs)
        ld = ld * jnp.ones((x.shape[0],), dtype=x.dtype)
        return h, ld
    return h


if __name__ == "__main__":
    key = jax.random.PRNGKey(0)
    k_x, k_loc, k_scale, k_x2 = jax.random.split(key, 4)

    N, C, H, W = 2, 4, 16, 16
    x = jax.random.normal(k_x, (N, C, H, W), dtype=jnp.float32)

    # Deterministic, non-trivial parameters (a "post-initialization" ActNorm
    # has arbitrary per-channel loc/scale).
    loc = 0.1 * jax.random.normal(k_loc, (1, C, 1, 1), dtype=jnp.float32)
    scale = 0.5 + jax.random.uniform(k_scale, (1, C, 1, 1), dtype=jnp.float32)

    # logdet=True path (returns (h, logdet))
    h, ld = actnorm_forward(x, loc, scale, logdet=True)
    jax.block_until_ready((h, ld))
    h_ref, ld_ref = _reference_forward(x, loc, scale, logdet=True)
    assert jnp.allclose(h, h_ref, atol=1e-5, rtol=1e-5)
    assert jnp.allclose(ld, ld_ref, atol=1e-5, rtol=1e-5)

    # logdet=False path (returns h only)
    h_only = actnorm_forward(x, loc, scale, logdet=False)
    jax.block_until_ready(h_only)
    assert jnp.allclose(h_only, _reference_forward(x, loc, scale), atol=1e-5, rtol=1e-5)

    # reverse path (h = x/scale - loc), same kernel with remapped scale/bias
    h_rev = actnorm_forward(x, loc, scale, reverse=True)
    jax.block_until_ready(h_rev)
    assert jnp.allclose(h_rev, _reference_forward(x, loc, scale, reverse=True),
                        atol=1e-5, rtol=1e-5)

    # 2-D input path (N, C) -> squeeze branch (exercises lane padding HW=1->128)
    x2d = jax.random.normal(k_x2, (N, C), dtype=jnp.float32)
    h2d = actnorm_forward(x2d, loc, scale, logdet=False)
    jax.block_until_ready(h2d)
    assert jnp.allclose(h2d, _reference_forward(x2d, loc, scale), atol=1e-5, rtol=1e-5)

    # bf16 path (exercises dtype-aware sublane alignment + row padding 8->16)
    x_bf16 = x.astype(jnp.bfloat16)
    h_bf16 = actnorm_forward(x_bf16, loc, scale, logdet=False)
    jax.block_until_ready(h_bf16)
    assert jnp.allclose(h_bf16.astype(jnp.float32),
                        _reference_forward(x, loc, scale),
                        atol=5e-2, rtol=5e-2)

    print("KERNEL_OK")
</pallas_src>

<mosaic_0001>
module attributes {stable_mosaic.version = 11 : i64} {
  func.func @_actnorm_kernel(%arg0: i32, %arg1: i32, %arg2: memref<8x256xf32, #tpu.memory_space<vmem>>, %arg3: memref<8x2xf32, #tpu.memory_space<vmem>>, %arg4: memref<8x256xf32, #tpu.memory_space<vmem>>) attributes {dimension_semantics = [#tpu.dimension_semantics<parallel>, #tpu.dimension_semantics<parallel>], iteration_bounds = array<i64: 1, 1>, scalar_prefetch = 0 : i64, scratch_operands = 0 : i64, tpu.core_type = #tpu.core_type<tc>, window_params = [{transform_indices = @transform_0, window_bounds = array<i64: 8, 256>}, {transform_indices = @transform_1, window_bounds = array<i64: 8, 2>}, {transform_indices = @transform_2, window_bounds = array<i64: 8, 256>}]} {
    %c0 = arith.constant 0 : index
    %c0_0 = arith.constant 0 : index
    %0 = vector.load %arg3[%c0, %c0_0] : memref<8x2xf32, #tpu.memory_space<vmem>>, vector<8x1xf32>
    %c0_1 = arith.constant 0 : index
    %c1 = arith.constant 1 : index
    %1 = vector.load %arg3[%c0_1, %c1] : memref<8x2xf32, #tpu.memory_space<vmem>>, vector<8x1xf32>
    %c0_2 = arith.constant 0 : index
    %c0_3 = arith.constant 0 : index
    %2 = vector.load %arg2[%c0_2, %c0_3] : memref<8x256xf32, #tpu.memory_space<vmem>>, vector<8x256xf32>
    %3 = vector.broadcast %0 : vector<8x1xf32> to vector<8x256xf32>
    %4 = arith.mulf %2, %3 : vector<8x256xf32>
    %5 = vector.broadcast %1 : vector<8x1xf32> to vector<8x256xf32>
    %6 = arith.addf %4, %5 : vector<8x256xf32>
    %c0_4 = arith.constant 0 : index
    %c0_5 = arith.constant 0 : index
    %7 = vector.load %arg4[%c0_4, %c0_5] : memref<8x256xf32, #tpu.memory_space<vmem>>, vector<8x256xf32>
    tpu.vector_store %arg4[%c0_4, %c0_5], %6 {strides = array<i32>} : memref<8x256xf32, #tpu.memory_space<vmem>>, vector<8x256xf32>,
    return
  }
  func.func @transform_0(%arg0: i32, %arg1: i32) -> (i32, i32) {
    %c0_i32 = arith.constant 0 : i32
    return %arg0, %arg1 : i32, i32
  }
  func.func @transform_1(%arg0: i32, %arg1: i32) -> (i32, i32) {
    %c0_i32 = arith.constant 0 : i32
    %c0_i32_0 = arith.constant 0 : i32
    return %arg0, %c0_i32 : i32, i32
  }
  func.func @transform_2(%arg0: i32, %arg1: i32) -> (i32, i32) {
    %c0_i32 = arith.constant 0 : i32
    return %arg0, %arg1 : i32, i32
  }
}

</mosaic_0001>

<llo_original>
// kernel: mul.5
$region0: #{mul.5}
  #allocation2 [shape = 's32[1]{0}', space=sflag, size = 0x4, scoped, tag = 'scoped memory for mul.5']
  %s0 = inlined_call_operand.<no memory space> [shape: f32[], index: 0, kind: input, shape index: {}]
  %s1 = inlined_call_operand.hbm [shape: f32[2], index: 1, kind: output, shape index: {}]
  %v2 = vstv %s0
  $region1: #{mul.5} parent=0
    #allocation0 [shape = 'u8[512]{0}', space=vmem, size = 0x400, scoped, tag = 'operand span for operand 1']
    #allocation1 [shape = 's32[1]{0}', space=sflag, size = 0x4, scoped, tag = 'scoped memory for mul.5']
    %3 = vsyncpa [#allocation1], 0
    %4 = vst [vmem:[#allocation0] sm:$0x1] %v2
    %s6 = ssub.s32 16, 16
    %7 = vsyncadd [#allocation1], %s6
    %s9 = sshll.u32 [#allocation0], 4
    %s10 = int_to_ptr.vmem [resolvable:$true] %s9
    %12 = dma.vmem_to_hbm [thread:$0]  %s10, 16, %s1, [#allocation1]
    %13 = dma.done [#allocation1], 16
    %14 = vsyncpa [#allocation1], 1

// kernel: actnorm_forward.1
$region0: #{actnorm_forward.1}
  #allocation0 [shape = 'u32[]', space=smem, size = 0x4, offset = 0x4, fixed_abs, tag = 'smem constant byte address 0x4 - core index']
  #allocation1 [shape = 'u32[144,128]{1,0:T(1,128)}', space=vmem, size = 0x12000, scoped, tag = 'internal scratch']
  %s0 = inlined_call_operand.vmem [shape: f32[8,256], index: 0, kind: input, shape index: {}]
  %s1 = inlined_call_operand.vmem [shape: f32[8,2], index: 1, kind: input, shape index: {}]
  %s2 = inlined_call_operand.vmem [shape: f32[8,256], index: 2, kind: output, shape index: {}]
  %s3 = sld [smem:[#allocation0]]
  $region18: #{actnorm_forward.1} parent=0
    _
  %s5 = ssub.s32 1, %s3
  %s6 = scalar_select 0, %s5, %s3
  // Predicated region
  $region2: #{actnorm_forward.1} parent=0 // pred_check
    _
  $region3: #{actnorm_forward.1} parent=0 // pred_check_branch
    %8 = sbr.rel (0) target = $region5
  $region4: #{actnorm_forward.1} parent=0 // pred_region
    _
  $region5: #{actnorm_forward.1} parent=0 // pred_fallthru
    _
  // Predicated region
  $region6: #{actnorm_forward.1} parent=0 // pred_check
    _
  $region7: #{actnorm_forward.1} parent=0 // pred_check_branch
    %10 = sbr.rel (0) target = $region9
  $region8: #{actnorm_forward.1} parent=0 // pred_region
    _
  $region9: #{actnorm_forward.1} parent=0 // pred_fallthru
    _
  %v11 = vld [vmem:[%s1] sm:$0xff]
  %v12 = vld [vmem:[%s0] sm:$0xff]
  %v13 = vld [vmem:[%s0 + $0x8] sm:$0xff]
  %15 = vset.pattern.permute.xlu0 0
  %16 = vperm.xlu0 %15, %v11
  %v17 = vpop.permute.xlu0 %16
  %v19 = vmul.f32 %v12, %v17
  %v20 = vmul.f32 %v13, %v17
  %21 = vset.pattern.permute.xlu0 1
  %22 = vperm.xlu0 %21, %v11
  %v23 = vpop.permute.xlu0 %22
  %v25 = vadd.f32 %v19, %v23
  %v26 = vadd.f32 %v20, %v23
  %27 = vst [vmem:[%s2] sm:$0xff] %v25
  %28 = vst [vmem:[%s2 + $0x8] sm:$0xff] %v26
  // Predicated region
  $region10: #{actnorm_forward.1} parent=0 // pred_check
    _
  $region11: #{actnorm_forward.1} parent=0 // pred_check_branch
    %30 = sbr.rel (0) target = $region13
  $region12: #{actnorm_forward.1} parent=0 // pred_region
    _
  $region13: #{actnorm_forward.1} parent=0 // pred_fallthru
    _
  // Predicated region
  $region14: #{actnorm_forward.1} parent=0 // pred_check
    _
  $region15: #{actnorm_forward.1} parent=0 // pred_check_branch
    %32 = sbr.rel (0) target = $region17
  $region16: #{actnorm_forward.1} parent=0 // pred_region
    _
  $region17: #{actnorm_forward.1} parent=0 // pred_fallthru
    _

</llo_original>
